<compile_context>
chip_gen: v7x
topology: tpu7x:2x2x1
jax: 0.10.0
libtpu: 0.0.40
codegen_flags: <defaults>
</compile_context>

<pallas_src>
import jax
import jax.numpy as jnp
import numpy as np
from jax.experimental import pallas as pl
from jax.experimental.pallas import tpu as pltpu

NEG_SLOPE = 0.01  # torch.nn.LeakyReLU() default negative_slope
LANE = 128
SUBLANE = 8


def _round_up(n, m):
    return ((n + m - 1) // m) * m


def _ceil_div(a, b):
    return -(-a // b)


def _leaky_relu(x):
    return jnp.where(x >= 0, x, NEG_SLOPE * x)


# ---------------------------------------------------------------------------
# Kernel bodies
# ---------------------------------------------------------------------------
def _make_mlp_kernel(n_extra: int, is_res: bool, compute_dtype, use_stream: bool):
    """Build the fused-MLP kernel body (static number of hidden linears)."""

    def hidden_step(h, w, b):
        y = jnp.dot(h.astype(compute_dtype), w, preferred_element_type=jnp.float32)
        y = _leaky_relu(y + b)
        if is_res:
            y = y + h
        return y

    def first_and_last(x_ref, w1_ref, b1_ref):
        h = jnp.dot(x_ref[...], w1_ref[...], preferred_element_type=jnp.float32)
        return _leaky_relu(h + b1_ref[...])

    def out_proj(h, wo_ref, bo_ref, o_ref):
        out = jnp.dot(h.astype(compute_dtype), wo_ref[...],
                      preferred_element_type=jnp.float32) + bo_ref[...]
        o_ref[...] = out.astype(o_ref.dtype)

    if n_extra == 0:
        def kernel(x_ref, w1_ref, b1_ref, wo_ref, bo_ref, o_ref):
            h = first_and_last(x_ref, w1_ref, b1_ref)
            out_proj(h, wo_ref, bo_ref, o_ref)
        return kernel

    if use_stream:
        # wh stays in HBM; one (H_p,H_p) layer double-buffered in VMEM.
        def kernel(x_ref, w1_ref, b1_ref, wh_hbm, bh_ref, wo_ref, bo_ref, o_ref,
                   wbuf, sem):
            # prime layer 0 so the DMA overlaps the first matmul
            pltpu.make_async_copy(wh_hbm.at[0], wbuf.at[0], sem.at[0]).start()
            h = first_and_last(x_ref, w1_ref, b1_ref)
            # statically unrolled layer loop (static slot indices).
            # TODO(synk): switch to lax.fori_loop with dynamic slots for very deep MLPs.
            for i in range(n_extra):
                slot = i & 1
                pltpu.make_async_copy(wh_hbm.at[i], wbuf.at[slot],
                                      sem.at[slot]).wait()
                if i + 1 < n_extra:
                    pltpu.make_async_copy(wh_hbm.at[i + 1], wbuf.at[1 - slot],
                                          sem.at[1 - slot]).start()
                h = hidden_step(h, wbuf[slot], bh_ref[i])
            out_proj(h, wo_ref, bo_ref, o_ref)
        return kernel

    # fully resident hidden-weight stack
    def kernel(x_ref, w1_ref, b1_ref, wh_ref, bh_ref, wo_ref, bo_ref, o_ref):
        h = first_and_last(x_ref, w1_ref, b1_ref)
        if n_extra >= 4:
            # bounded live ranges + visible loop for the LLO scheduler
            def body(i, hc):
                return hidden_step(hc, wh_ref[i], bh_ref[i])
            h = jax.lax.fori_loop(0, n_extra, body, h, unroll=2)
        else:
            for i in range(n_extra):
                h = hidden_step(h, wh_ref[i], bh_ref[i])
        out_proj(h, wo_ref, bo_ref, o_ref)
    return kernel


# ---------------------------------------------------------------------------
# Parameter preparation (pad + cast ONCE, outside the hot path)
# ---------------------------------------------------------------------------
def prepare_mlp_params(params, compute_dtype=jnp.bfloat16):
    IN, H = params["w1"].shape
    OUT = params["wo"].shape[1]
    n_extra = int(params["n_extra_hidden"])

    IN_p, H_p, OUT_p = (_round_up(IN, LANE), _round_up(H, LANE),
                        _round_up(OUT, LANE))

    w1 = jnp.zeros((IN_p, H_p), compute_dtype).at[:IN, :H].set(
        params["w1"].astype(compute_dtype))
    b1 = jnp.zeros((1, H_p), jnp.float32).at[:, :H].set(
        params["b1"].astype(jnp.float32))
    wo = jnp.zeros((H_p, OUT_p), compute_dtype).at[:H, :OUT].set(
        params["wo"].astype(compute_dtype))
    bo = jnp.zeros((1, OUT_p), jnp.float32).at[:, :OUT].set(
        params["bo"].astype(jnp.float32))

    if n_extra > 0:
        wh = jnp.zeros((n_extra, H_p, H_p), compute_dtype).at[:, :H, :H].set(
            params["wh"].astype(compute_dtype))
        bh = jnp.zeros((n_extra, 1, H_p), jnp.float32).at[:, :, :H].set(
            params["bh"].astype(jnp.float32))
    else:
        wh, bh = None, None

    return dict(w1=w1, b1=b1, wh=wh, bh=bh, wo=wo, bo=bo,
                n_extra_hidden=n_extra,
                dims=(IN, H, OUT), padded_dims=(IN_p, H_p, OUT_p),
                compute_dtype=compute_dtype, _prepared=True)


# ---------------------------------------------------------------------------
# Wrapper
# ---------------------------------------------------------------------------
def mlp_pallas(x, params, *, is_res=False, batch_tile=None,
               compute_dtype=jnp.bfloat16, force_stream=False):
    """Fused MLP forward. `params` may be raw (from init_mlp_params) or prepared."""
    if not params.get("_prepared", False):
        params = prepare_mlp_params(params, compute_dtype)
    compute_dtype = params["compute_dtype"]
    IN, H, OUT = params["dims"]
    IN_p, H_p, OUT_p = params["padded_dims"]
    n_extra = int(params["n_extra_hidden"])

    B = x.shape[0]
    assert x.shape[1] == IN

    itemsize = jnp.dtype(compute_dtype).itemsize
    # dtype-aware sublane packing (bf16 packs 16 rows per vreg group)
    sub = max(SUBLANE, 32 // itemsize)

    # ----- per-generation VMEM budget -----
    try:
        vmem_cap = int(pltpu.get_tpu_info().vmem_capacity_bytes)
    except Exception:
        vmem_cap = 64 << 20  # conservative (v7x per-TC) fallback
    vmem_budget = max(min(vmem_cap - (8 << 20), 112 << 20), 32 << 20)

    resident_w_bytes = (IN_p * H_p + H_p * OUT_p) * itemsize
    wh_bytes = n_extra * H_p * H_p * itemsize
    bias_bytes = ((1 + n_extra) * H_p + OUT_p) * 4

    def footprint(bt_, streaming):
        tile = 2 * bt_ * IN_p * itemsize + 2 * bt_ * OUT_p * 4  # dbl-buffered x/out
        interm = 4 * bt_ * H_p * 4                              # live f32 intermediates
        wbytes = resident_w_bytes + (2 * H_p * H_p * itemsize if streaming
                                     else wh_bytes)
        return wbytes + bias_bytes + tile + interm + (4 << 20)

    if batch_tile is None:
        batch_tile = 512 if footprint(512, False) <= vmem_budget else 256

    # ----- batch tiling (>= 2 grid steps when possible, for v7x's 2 TCs) -----
    B_sub = _round_up(B, sub)
    n_steps = _ceil_div(B_sub, batch_tile)
    if n_steps < 2 and B_sub >= 2 * sub:
        n_steps = 2
    bt = min(_round_up(_ceil_div(B_sub, n_steps), sub), B_sub)
    B_p = _round_up(B, bt)
    grid = (B_p // bt,)

    # ----- resident vs streamed hidden-weight stack -----
    use_stream = n_extra > 0 and (force_stream or footprint(bt, False) > vmem_budget)
    need = footprint(bt, True) if use_stream else footprint(bt, False)
    vmem_bytes = int(min(max(need, 32 << 20), vmem_budget))

    # ----- pad x only if needed -----
    x_in = x.astype(compute_dtype)
    if B_p != B or IN_p != IN:
        xp = jnp.zeros((B_p, IN_p), compute_dtype).at[:B, :IN].set(x_in)
    else:
        xp = x_in

    resident = pl.Buffered(1)  # constant-index blocks: fetch once, single buffer

    args = [xp, params["w1"], params["b1"]]
    in_specs = [
        pl.BlockSpec((bt, IN_p), lambda i: (i, 0)),                         # x tile
        pl.BlockSpec((IN_p, H_p), lambda i: (0, 0), pipeline_mode=resident),  # w1
        pl.BlockSpec((1, H_p), lambda i: (0, 0), pipeline_mode=resident),     # b1
    ]
    scratch_shapes = []
    if n_extra > 0:
        args += [params["wh"], params["bh"]]
        if use_stream:
            in_specs += [
                pl.BlockSpec(memory_space=pl.ANY),                            # wh (HBM)
                pl.BlockSpec((n_extra, 1, H_p), lambda i: (0, 0, 0),
                             pipeline_mode=resident),                         # bh
            ]
            scratch_shapes += [pltpu.VMEM((2, H_p, H_p), compute_dtype),
                               pltpu.SemaphoreType.DMA((2,))]
        else:
            in_specs += [
                pl.BlockSpec((n_extra, H_p, H_p), lambda i: (0, 0, 0),
                             pipeline_mode=resident),                         # wh
                pl.BlockSpec((n_extra, 1, H_p), lambda i: (0, 0, 0),
                             pipeline_mode=resident),                         # bh
            ]
    args += [params["wo"], params["bo"]]
    in_specs += [
        pl.BlockSpec((H_p, OUT_p), lambda i: (0, 0), pipeline_mode=resident),  # wo
        pl.BlockSpec((1, OUT_p), lambda i: (0, 0), pipeline_mode=resident),    # bo
    ]

    kernel = _make_mlp_kernel(n_extra, is_res, compute_dtype, use_stream)

    flops = 2 * B_p * (IN_p * H_p + n_extra * H_p * H_p + H_p * OUT_p)
    bytes_accessed = (B_p * IN_p * itemsize
                      + (IN_p * H_p + n_extra * H_p * H_p + H_p * OUT_p) * itemsize
                      + bias_bytes + B_p * OUT_p * 4)

    out_p = pl.pallas_call(
        kernel,
        out_shape=jax.ShapeDtypeStruct((B_p, OUT_p), jnp.float32),
        grid_spec=pltpu.PrefetchScalarGridSpec(
            num_scalar_prefetch=0,
            grid=grid,
            in_specs=in_specs,
            out_specs=pl.BlockSpec((bt, OUT_p), lambda i: (i, 0)),
            scratch_shapes=scratch_shapes,
        ),
        compiler_params=pltpu.CompilerParams(
            dimension_semantics=("parallel",),
            vmem_limit_bytes=vmem_bytes,
        ),
        cost_estimate=pl.CostEstimate(flops=flops, transcendentals=0,
                                      bytes_accessed=bytes_accessed),
    )(*args)

    if B_p != B or OUT_p != OUT:
        out_p = out_p[:B, :OUT]
    return out_p


# ---------------------------------------------------------------------------
# Deterministic parameter init mirroring the PyTorch module's reset_parameters
# (kaiming_uniform for leaky_relu layers, biases zeroed).
# ---------------------------------------------------------------------------
def _kaiming_uniform(key, fan_out, fan_in, a=0.0):
    gain = np.sqrt(2.0 / (1.0 + a * a))
    bound = gain * np.sqrt(3.0 / fan_in)
    # PyTorch stores Linear weight as (out, in); sample that then transpose
    w = jax.random.uniform(key, (fan_out, fan_in), jnp.float32, -bound, bound)
    return w.T  # kernel layout: (in, out)


def init_mlp_params(key, input_size, output_size, hidden_size, n_hidden_layers):
    n_extra = n_hidden_layers - 1
    keys = jax.random.split(key, 2 + max(n_extra, 1))

    w1 = _kaiming_uniform(keys[0], hidden_size, input_size, a=NEG_SLOPE)
    b1 = jnp.zeros((1, hidden_size), jnp.float32)

    if n_extra > 0:
        wh = jnp.stack(
            [_kaiming_uniform(keys[2 + i], hidden_size, hidden_size, a=NEG_SLOPE)
             for i in range(n_extra)], axis=0)
        bh = jnp.zeros((n_extra, 1, hidden_size), jnp.float32)
    else:
        wh = jnp.zeros((0, hidden_size, hidden_size), jnp.float32)
        bh = jnp.zeros((0, 1, hidden_size), jnp.float32)

    # `linear_init(self.out)` uses the default 'leaky_relu' string => a = 0
    wo = _kaiming_uniform(keys[1], output_size, hidden_size, a=0.0)
    bo = jnp.zeros((1, output_size), jnp.float32)

    return dict(w1=w1, b1=b1, wh=wh, bh=bh, wo=wo, bo=bo,
                n_extra_hidden=n_extra)


def mlp_reference(x, params, *, is_res=False, compute_dtype=jnp.float32):
    """Plain-JAX reference (optionally with the same bf16 operand casts)."""
    def mm(a, w):
        return jnp.dot(a.astype(compute_dtype), w.astype(compute_dtype),
                       preferred_element_type=jnp.float32)

    h = _leaky_relu(mm(x, params["w1"]) + params["b1"])
    for i in range(params["n_extra_hidden"]):
        y = _leaky_relu(mm(h, params["wh"][i]) + params["bh"][i])
        if is_res:
            y = y + h
        h = y
    return mm(h, params["wo"]) + params["bo"]


if __name__ == "__main__":
    # Small shapes consistent with the module's forward:
    #   x: (batch, input_size) -> out: (batch, output_size)
    batch, input_size, hidden_size, output_size = 16, 16, 32, 8

    key = jax.random.PRNGKey(0)
    kx, kp1, kp2, kp3 = jax.random.split(key, 4)
    x = jax.random.normal(kx, (batch, input_size), jnp.float32)

    # Config 1: n_hidden_layers=2 with residuals (resident-weight path);
    # weights padded/cast once via prepare_mlp_params (hot path does no padding).
    params = init_mlp_params(kp1, input_size, output_size, hidden_size,
                             n_hidden_layers=2)
    prepped = prepare_mlp_params(params)
    out = jax.block_until_ready(mlp_pallas(x, prepped, is_res=True))
    ref_same = mlp_reference(x, params, is_res=True, compute_dtype=jnp.bfloat16)
    ref_f32 = mlp_reference(x, params, is_res=True, compute_dtype=jnp.float32)
    np.testing.assert_allclose(np.asarray(out), np.asarray(ref_same),
                               rtol=2e-3, atol=2e-3)   # matched-precision check
    np.testing.assert_allclose(np.asarray(out), np.asarray(ref_f32),
                               rtol=5e-2, atol=5e-2)   # module-semantics sanity check

    # Same config through the HBM-streaming (manual DMA double-buffer) path
    out_s = jax.block_until_ready(mlp_pallas(x, prepped, is_res=True,
                                             force_stream=True))
    np.testing.assert_allclose(np.asarray(out_s), np.asarray(out),
                               rtol=1e-5, atol=1e-5)

    # Config 2: n_hidden_layers=1 (no hidden linears; wh/bh never loaded)
    params0 = init_mlp_params(kp2, input_size, output_size, hidden_size,
                              n_hidden_layers=1)
    out0 = jax.block_until_ready(mlp_pallas(x, params0, is_res=False))
    ref0 = mlp_reference(x, params0, is_res=False, compute_dtype=jnp.bfloat16)
    np.testing.assert_allclose(np.asarray(out0), np.asarray(ref0),
                               rtol=2e-3, atol=2e-3)

    # Config 3: n_hidden_layers=5 (exercises the fori_loop hidden-layer path)
    params5 = init_mlp_params(kp3, input_size, output_size, hidden_size,
                              n_hidden_layers=5)
    out5 = jax.block_until_ready(mlp_pallas(x, params5, is_res=True))
    ref5 = mlp_reference(x, params5, is_res=True, compute_dtype=jnp.bfloat16)
    np.testing.assert_allclose(np.asarray(out5), np.asarray(ref5),
                               rtol=3e-3, atol=3e-3)

    print("KERNEL_OK")
</pallas_src>

<mosaic_0001>
module attributes {stable_mosaic.version = 11 : i64} {
  func.func @kernel(%arg0: i32, %arg1: memref<16x128xbf16, #tpu.memory_space<vmem>>, %arg2: memref<128x128xbf16, #tpu.memory_space<vmem>>, %arg3: memref<1x128xf32, #tpu.memory_space<vmem>>, %arg4: memref<1x128x128xbf16, #tpu.memory_space<vmem>>, %arg5: memref<1x1x128xf32, #tpu.memory_space<vmem>>, %arg6: memref<128x128xbf16, #tpu.memory_space<vmem>>, %arg7: memref<1x128xf32, #tpu.memory_space<vmem>>, %arg8: memref<16x128xf32, #tpu.memory_space<vmem>>) attributes {dimension_semantics = [#tpu.dimension_semantics<parallel>], iteration_bounds = array<i64: 1>, scalar_prefetch = 0 : i64, scratch_operands = 0 : i64, tpu.core_type = #tpu.core_type<tc>, window_params = [{transform_indices = @transform_0, window_bounds = array<i64: 16, 128>}, {pipeline_mode = #tpu.pipeline_mode<synchronous>, transform_indices = @transform_1, window_bounds = array<i64: 128, 128>}, {pipeline_mode = #tpu.pipeline_mode<synchronous>, transform_indices = @transform_2, window_bounds = array<i64: 1, 128>}, {pipeline_mode = #tpu.pipeline_mode<synchronous>, transform_indices = @transform_3, window_bounds = array<i64: 1, 128, 128>}, {pipeline_mode = #tpu.pipeline_mode<synchronous>, transform_indices = @transform_4, window_bounds = array<i64: 1, 1, 128>}, {pipeline_mode = #tpu.pipeline_mode<synchronous>, transform_indices = @transform_5, window_bounds = array<i64: 128, 128>}, {pipeline_mode = #tpu.pipeline_mode<synchronous>, transform_indices = @transform_6, window_bounds = array<i64: 1, 128>}, {transform_indices = @transform_7, window_bounds = array<i64: 16, 128>}]} {
    %c0 = arith.constant 0 : index
    %c0_0 = arith.constant 0 : index
    %0 = vector.load %arg1[%c0, %c0_0] : memref<16x128xbf16, #tpu.memory_space<vmem>>, vector<16x128xbf16>
    %c0_1 = arith.constant 0 : index
    %c0_2 = arith.constant 0 : index
    %1 = vector.load %arg2[%c0_1, %c0_2] : memref<128x128xbf16, #tpu.memory_space<vmem>>, vector<128x128xbf16>
    %cst = arith.constant dense<0.000000e+00> : vector<16x128xf32>
    %2 = tpu.matmul %0, %1, %cst {dimension_numbers = #tpu.dot_dimension_numbers<[1], [0], [0], [1], [0, 0, 1, 1], [], []>} : vector<16x128xbf16>, vector<128x128xbf16>, vector<16x128xf32> -> vector<16x128xf32>
    %c0_3 = arith.constant 0 : index
    %c0_4 = arith.constant 0 : index
    %3 = vector.load %arg3[%c0_3, %c0_4] : memref<1x128xf32, #tpu.memory_space<vmem>>, vector<1x128xf32>
    %4 = vector.broadcast %3 : vector<1x128xf32> to vector<16x128xf32>
    %5 = arith.addf %2, %4 : vector<16x128xf32>
    %cst_5 = arith.constant 0.000000e+00 : f32
    %6 = vector.broadcast %cst_5 : f32 to vector<16x128xf32>
    %7 = arith.cmpf oge, %5, %6 : vector<16x128xf32>
    %cst_6 = arith.constant 0.00999999977 : f32
    %8 = vector.broadcast %cst_6 : f32 to vector<16x128xf32>
    %9 = arith.mulf %8, %5 : vector<16x128xf32>
    %10 = arith.select %7, %5, %9 : vector<16x128xi1>, vector<16x128xf32>
    %c0_7 = arith.constant 0 : index
    %c0_8 = arith.constant 0 : index
    %c0_9 = arith.constant 0 : index
    %11 = vector.load %arg4[%c0_7, %c0_8, %c0_9] : memref<1x128x128xbf16, #tpu.memory_space<vmem>>, vector<1x128x128xbf16>
    %12 = vector.shape_cast %11 : vector<1x128x128xbf16> to vector<128x128xbf16>
    %c0_10 = arith.constant 0 : index
    %c0_11 = arith.constant 0 : index
    %c0_12 = arith.constant 0 : index
    %13 = vector.load %arg5[%c0_10, %c0_11, %c0_12] : memref<1x1x128xf32, #tpu.memory_space<vmem>>, vector<1x1x128xf32>
    %14 = vector.shape_cast %13 : vector<1x1x128xf32> to vector<1x128xf32>
    %15 = arith.truncf %10 : vector<16x128xf32> to vector<16x128xbf16>
    %cst_13 = arith.constant dense<0.000000e+00> : vector<16x128xf32>
    %16 = tpu.matmul %15, %12, %cst_13 {dimension_numbers = #tpu.dot_dimension_numbers<[1], [0], [0], [1], [0, 0, 1, 1], [], []>} : vector<16x128xbf16>, vector<128x128xbf16>, vector<16x128xf32> -> vector<16x128xf32>
    %17 = vector.broadcast %14 : vector<1x128xf32> to vector<16x128xf32>
    %18 = arith.addf %16, %17 : vector<16x128xf32>
    %cst_14 = arith.constant 0.000000e+00 : f32
    %19 = vector.broadcast %cst_14 : f32 to vector<16x128xf32>
    %20 = arith.cmpf oge, %18, %19 : vector<16x128xf32>
    %cst_15 = arith.constant 0.00999999977 : f32
    %21 = vector.broadcast %cst_15 : f32 to vector<16x128xf32>
    %22 = arith.mulf %21, %18 : vector<16x128xf32>
    %23 = arith.select %20, %18, %22 : vector<16x128xi1>, vector<16x128xf32>
    %24 = arith.addf %23, %10 : vector<16x128xf32>
    %25 = arith.truncf %24 : vector<16x128xf32> to vector<16x128xbf16>
    %c0_16 = arith.constant 0 : index
    %c0_17 = arith.constant 0 : index
    %26 = vector.load %arg6[%c0_16, %c0_17] : memref<128x128xbf16, #tpu.memory_space<vmem>>, vector<128x128xbf16>
    %cst_18 = arith.constant dense<0.000000e+00> : vector<16x128xf32>
    %27 = tpu.matmul %25, %26, %cst_18 {dimension_numbers = #tpu.dot_dimension_numbers<[1], [0], [0], [1], [0, 0, 1, 1], [], []>} : vector<16x128xbf16>, vector<128x128xbf16>, vector<16x128xf32> -> vector<16x128xf32>
    %c0_19 = arith.constant 0 : index
    %c0_20 = arith.constant 0 : index
    %28 = vector.load %arg7[%c0_19, %c0_20] : memref<1x128xf32, #tpu.memory_space<vmem>>, vector<1x128xf32>
    %29 = vector.broadcast %28 : vector<1x128xf32> to vector<16x128xf32>
    %30 = arith.addf %27, %29 : vector<16x128xf32>
    %c0_21 = arith.constant 0 : index
    %c0_22 = arith.constant 0 : index
    %31 = vector.load %arg8[%c0_21, %c0_22] : memref<16x128xf32, #tpu.memory_space<vmem>>, vector<16x128xf32>
    tpu.vector_store %arg8[%c0_21, %c0_22], %30 {strides = array<i32>} : memref<16x128xf32, #tpu.memory_space<vmem>>, vector<16x128xf32>,
    return
  }
  func.func @transform_0(%arg0: i32) -> (i32, i32) {
    %c0_i32 = arith.constant 0 : i32
    %c0_i32_0 = arith.constant 0 : i32
    return %arg0, %c0_i32 : i32, i32
  }
  func.func @transform_1(%arg0: i32) -> (i32, i32) {
    %c0_i32 = arith.constant 0 : i32
    %c0_i32_0 = arith.constant 0 : i32
    %c0_i32_1 = arith.constant 0 : i32
    return %c0_i32, %c0_i32_0 : i32, i32
  }
  func.func @transform_2(%arg0: i32) -> (i32, i32) {
    %c0_i32 = arith.constant 0 : i32
    %c0_i32_0 = arith.constant 0 : i32
    %c0_i32_1 = arith.constant 0 : i32
    return %c0_i32, %c0_i32_0 : i32, i32
  }
  func.func @transform_3(%arg0: i32) -> (i32, i32, i32) {
    %c0_i32 = arith.constant 0 : i32
    %c0_i32_0 = arith.constant 0 : i32
    %c0_i32_1 = arith.constant 0 : i32
    %c0_i32_2 = arith.constant 0 : i32
    return %c0_i32, %c0_i32_0, %c0_i32_1 : i32, i32, i32
  }
  func.func @transform_4(%arg0: i32) -> (i32, i32, i32) {
    %c0_i32 = arith.constant 0 : i32
    %c0_i32_0 = arith.constant 0 : i32
    %c0_i32_1 = arith.constant 0 : i32
    %c0_i32_2 = arith.constant 0 : i32
    return %c0_i32, %c0_i32_0, %c0_i32_1 : i32, i32, i32
  }
  func.func @transform_5(%arg0: i32) -> (i32, i32) {
    %c0_i32 = arith.constant 0 : i32
    %c0_i32_0 = arith.constant 0 : i32
    %c0_i32_1 = arith.constant 0 : i32
    return %c0_i32, %c0_i32_0 : i32, i32
  }
  func.func @transform_6(%arg0: i32) -> (i32, i32) {
    %c0_i32 = arith.constant 0 : i32
    %c0_i32_0 = arith.constant 0 : i32
    %c0_i32_1 = arith.constant 0 : i32
    return %c0_i32, %c0_i32_0 : i32, i32
  }
  func.func @transform_7(%arg0: i32) -> (i32, i32) {
    %c0_i32 = arith.constant 0 : i32
    %c0_i32_0 = arith.constant 0 : i32
    return %arg0, %c0_i32 : i32, i32
  }
}

</mosaic_0001>

<llo_original>
// kernel: tpu_custom_call.1
$region0: #{tpu_custom_call.1}
  #allocation0 [shape = 'u32[]', space=smem, size = 0x4, offset = 0x4, fixed_abs, tag = 'smem constant byte address 0x4 - core index']
  #allocation1 [shape = 'u32[144,128]{1,0:T(1,128)}', space=vmem, size = 0x12000, scoped, tag = 'internal scratch']
  %s0 = inlined_call_operand.hbm [shape: bf16[16,128], index: 0, kind: input, shape index: {}]
  %s1 = inlined_call_operand.hbm [shape: bf16[128,128], index: 1, kind: input, shape index: {}]
  %s2 = inlined_call_operand.vmem [shape: f32[1,128], index: 2, kind: input, shape index: {}]
  %s3 = inlined_call_operand.hbm [shape: bf16[1,128,128], index: 3, kind: input, shape index: {}]
  %s4 = inlined_call_operand.vmem [shape: f32[1,1,128], index: 4, kind: input, shape index: {}]
  %s5 = inlined_call_operand.hbm [shape: bf16[128,128], index: 5, kind: input, shape index: {}]
  %s6 = inlined_call_operand.vmem [shape: f32[1,128], index: 6, kind: input, shape index: {}]
  %s7 = inlined_call_operand.hbm [shape: f32[16,128], index: 7, kind: output, shape index: {}]
  %s8 = sld [smem:[#allocation0]]
  $region54: #{tpu_custom_call.1} parent=0
    _
  %s10 = ssub.s32 1, %s8
  %s11 = scalar_select 0, %s10, %s8
  $region1: #{tpu_custom_call.1} parent=0
    #allocation2 [shape = 'u8[4096]{0}', space=vmem, size = 0x1000, scoped, tag = 'input window, operand 0, single buffered']
    #allocation3 [shape = 's32[1]{0}', space=sflag, size = 0x4, scoped, tag = 'scoped memory for tpu_custom_call.1']
    #allocation4 [shape = 's32[1]{0}', space=sflag, size = 0x4, scoped, tag = 'scoped memory for tpu_custom_call.1']
    #allocation5 [shape = 'u8[32768]{0}', space=vmem, size = 0x8000, scoped, tag = 'input window, operand 1, single buffered']
    #allocation6 [shape = 's32[1]{0}', space=sflag, size = 0x4, scoped, tag = 'scoped memory for tpu_custom_call.1']
    #allocation7 [shape = 'u8[32768]{0}', space=vmem, size = 0x8000, scoped, tag = 'input window, operand 3, single buffered']
    #allocation8 [shape = 'u8[32768]{0}', space=vmem, size = 0x8000, scoped, tag = 'input window, operand 5, single buffered']
    #allocation9 [shape = 's32[1]{0}', space=sflag, size = 0x4, scoped, tag = 'scoped memory for tpu_custom_call.1']
    #allocation10 [shape = 'u8[8192]{0}', space=vmem, size = 0x2000, scoped, tag = 'output window, operand 0, single buffered']
    %12 = vsyncpa [#allocation3], 0
    %13 = vsyncpa [#allocation6], 0
    %14 = vsyncpa [#allocation9], 0
    %15 = vsyncpa [#allocation4], 0
    // Predicated region
    $region2: #{tpu_custom_call.1} parent=1 // pred_check
      _
    $region3: #{tpu_custom_call.1} parent=1 // pred_check_branch
      %17 = sbr.rel (0) target = $region5
    $region4: #{tpu_custom_call.1} parent=1 // pred_region
      %s19 = ssub.s32 128, 128
      %20 = vsyncadd [#allocation3], %s19
      %s21 = sshll.u32 [#allocation2], 4
      %s22 = int_to_ptr.vmem [resolvable:$true] %s21
      %27 = dma.hbm_to_vmem [thread:$0]  %s0, 128, %s22, [#allocation3], 64, 64, 4
    $region5: #{tpu_custom_call.1} parent=1 // pred_fallthru
      _
    // Predicated region
    $region6: #{tpu_custom_call.1} parent=1 // pred_check
      _
    $region7: #{tpu_custom_call.1} parent=1 // pred_check_branch
      %29 = sbr.rel (0) target = $region9
    $region8: #{tpu_custom_call.1} parent=1 // pred_region
      %s31 = ssub.s32 1024, 1024
      %32 = vsyncadd [#allocation6], %s31
      %s33 = sshll.u32 [#allocation5], 4
      %s34 = int_to_ptr.vmem [resolvable:$true] %s33
      %39 = dma.hbm_to_vmem [thread:$0]  %s1, 1024, %s34, [#allocation6], 64, 64, 4
    $region9: #{tpu_custom_call.1} parent=1 // pred_fallthru
      _
    // Predicated region
    $region10: #{tpu_custom_call.1} parent=1 // pred_check
      _
    $region11: #{tpu_custom_call.1} parent=1 // pred_check_branch
      %41 = sbr.rel (0) target = $region13
    $region12: #{tpu_custom_call.1} parent=1 // pred_region
      _
    $region13: #{tpu_custom_call.1} parent=1 // pred_fallthru
      _
    // Predicated region
    $region14: #{tpu_custom_call.1} parent=1 // pred_check
      _
    $region15: #{tpu_custom_call.1} parent=1 // pred_check_branch
      %43 = sbr.rel (0) target = $region17
    $region16: #{tpu_custom_call.1} parent=1 // pred_region
      %s45 = ssub.s32 1024, 1024
      %46 = vsyncadd [#allocation6], %s45
      %s47 = sshll.u32 [#allocation7], 4
      %s48 = int_to_ptr.vmem [resolvable:$true] %s47
      %53 = dma.hbm_to_vmem [thread:$0]  %s3, 1024, %s48, [#allocation6], 64, 64, 4
    $region17: #{tpu_custom_call.1} parent=1 // pred_fallthru
      _
    // Predicated region
    $region18: #{tpu_custom_call.1} parent=1 // pred_check
      _
    $region19: #{tpu_custom_call.1} parent=1 // pred_check_branch
      %55 = sbr.rel (0) target = $region21
    $region20: #{tpu_custom_call.1} parent=1 // pred_region
      _
    $region21: #{tpu_custom_call.1} parent=1 // pred_fallthru
      _
    // Predicated region
    $region22: #{tpu_custom_call.1} parent=1 // pred_check
      _
    $region23: #{tpu_custom_call.1} parent=1 // pred_check_branch
      %57 = sbr.rel (0) target = $region25
    $region24: #{tpu_custom_call.1} parent=1 // pred_region
      %s59 = ssub.s32 1024, 1024
      %60 = vsyncadd [#allocation9], %s59
      %s61 = sshll.u32 [#allocation8], 4
      %s62 = int_to_ptr.vmem [resolvable:$true] %s61
      %67 = dma.hbm_to_vmem [thread:$0]  %s5, 1024, %s62, [#allocation9], 64, 64, 4
    $region25: #{tpu_custom_call.1} parent=1 // pred_fallthru
      _
    // Predicated region
    $region26: #{tpu_custom_call.1} parent=1 // pred_check
      _
    $region27: #{tpu_custom_call.1} parent=1 // pred_check_branch
      %69 = sbr.rel (0) target = $region29
    $region28: #{tpu_custom_call.1} parent=1 // pred_region
      _
    $region29: #{tpu_custom_call.1} parent=1 // pred_fallthru
      _
    // Predicated region
    $region30: #{tpu_custom_call.1} parent=1 // pred_check
      _
    $region31: #{tpu_custom_call.1} parent=1 // pred_check_branch
      %71 = sbr.rel (0) target = $region33
    $region32: #{tpu_custom_call.1} parent=1 // pred_region
      %72 = dma.done [#allocation3], 128
    $region33: #{tpu_custom_call.1} parent=1 // pred_fallthru
      _
    // Predicated region
    $region34: #{tpu_custom_call.1} parent=1 // pred_check
      _
    $region35: #{tpu_custom_call.1} parent=1 // pred_check_branch
      %74 = sbr.rel (0) target = $region37
    $region36: #{tpu_custom_call.1} parent=1 // pred_region
      %75 = dma.done [#allocation6], 1024
    $region37: #{tpu_custom_call.1} parent=1 // pred_fallthru
      _
    // Predicated region
    $region38: #{tpu_custom_call.1} parent=1 // pred_check
      _
    $region39: #{tpu_custom_call.1} parent=1 // pred_check_branch
      %77 = sbr.rel (0) target = $region41
    $region40: #{tpu_custom_call.1} parent=1 // pred_region
      %78 = dma.done [#allocation6], 1024
    $region41: #{tpu_custom_call.1} parent=1 // pred_fallthru
      _
    // Predicated region
    $region42: #{tpu_custom_call.1} parent=1 // pred_check
      _
    $region43: #{tpu_custom_call.1} parent=1 // pred_check_branch
      %80 = sbr.rel (0) target = $region45
    $region44: #{tpu_custom_call.1} parent=1 // pred_region
      %81 = dma.done [#allocation9], 1024
    $region45: #{tpu_custom_call.1} parent=1 // pred_fallthru
      _
    %v83 = vld [vmem:[#allocation2] sm:$0xf]
    %v84 = vld [vmem:[#allocation2 + $0x4] sm:$0xf]
    %v85 = vld [vmem:[#allocation5] sm:$0xf]
    %v86 = vld [vmem:[#allocation5 + $0x4] sm:$0xf]
    %v87 = vld [vmem:[#allocation5 + $0x8] sm:$0xf]
    %v88 = vld [vmem:[#allocation5 + $0xc] sm:$0xf]
    %v89 = vld [vmem:[#allocation5 + $0x10] sm:$0xf]
    %v90 = vld [vmem:[#allocation5 + $0x14] sm:$0xf]
    %v91 = vld [vmem:[#allocation5 + $0x18] sm:$0xf]
    %v92 = vld [vmem:[#allocation5 + $0x1c] sm:$0xf]
    %v93 = vld [vmem:[#allocation5 + $0x20] sm:$0xf]
    %v94 = vld [vmem:[#allocation5 + $0x24] sm:$0xf]
    %v95 = vld [vmem:[#allocation5 + $0x28] sm:$0xf]
    %v96 = vld [vmem:[#allocation5 + $0x2c] sm:$0xf]
    %v97 = vld [vmem:[#allocation5 + $0x30] sm:$0xf]
    %v98 = vld [vmem:[#allocation5 + $0x34] sm:$0xf]
    %v99 = vld [vmem:[#allocation5 + $0x38] sm:$0xf]
    %v100 = vld [vmem:[#allocation5 + $0x3c] sm:$0xf]
    %v101 = vld [vmem:[%s2] sm:$0x1]
    %v103 = vlaneseq
    %v104 = vshrl.u32 %v103, 7
    %v105 = vsub.s32 0, %v104
    %v106 = vrot.slane %v101, %v105
    %v110 = vunpack.c.l.b16 %v83
    %v111 = vunpack.c.l.b16 %v84
    %v112 = vpack.c.b16 %v111, %v110
    %v130 = vunpack.c.l.b16 %v85
    %v131 = vunpack.c.l.b16 %v86
    %v132 = vunpack.c.l.b16 %v87
    %v133 = vunpack.c.l.b16 %v88
    %v134 = vunpack.c.l.b16 %v89
    %v135 = vunpack.c.l.b16 %v90
    %v136 = vunpack.c.l.b16 %v91
    %v137 = vunpack.c.l.b16 %v92
    %v138 = vunpack.c.l.b16 %v93
    %v139 = vunpack.c.l.b16 %v94
    %v140 = vunpack.c.l.b16 %v95
    %v141 = vunpack.c.l.b16 %v96
    %v142 = vunpack.c.l.b16 %v97
    %v143 = vunpack.c.l.b16 %v98
    %v144 = vunpack.c.l.b16 %v99
    %v145 = vunpack.c.l.b16 %v100
    %v146 = vpack.c.b16 %v131, %v130
    %v147 = vpack.c.b16 %v133, %v132
    %v148 = vpack.c.b16 %v135, %v134
    %v149 = vpack.c.b16 %v137, %v136
    %v150 = vpack.c.b16 %v139, %v138
    %v151 = vpack.c.b16 %v141, %v140
    %v152 = vpack.c.b16 %v143, %v142
    %v153 = vpack.c.b16 %v145, %v144
    %162 = vmatprep.subr.bf16.mxu0 0
    %163 = vmatpush1.bf16.msra.mxu0 %v146
    %164 = vmatprep.subr.bf16.mxu0 0
    %165 = vmatpush1.bf16.msra.mxu0 %v147
    %166 = vmatprep.subr.bf16.mxu0 0
    %167 = vmatpush1.bf16.msra.mxu0 %v148
    %168 = vmatprep.subr.bf16.mxu0 0
    %169 = vmatpush1.bf16.msra.mxu0 %v149
    %170 = vmatprep.subr.bf16.mxu0 0
    %171 = vmatpush1.bf16.msra.mxu0 %v150
    %172 = vmatprep.subr.bf16.mxu0 0
    %173 = vmatpush1.bf16.msra.mxu0 %v151
    %174 = vmatprep.subr.bf16.mxu0 0
    %175 = vmatpush1.bf16.msra.mxu0 %v152
    %176 = vmatprep.subr.bf16.mxu0 0
    %177 = vmatpush1.bf16.msra.mxu0 %v153
    %178 = vmatprep.subr.bf16.mxu0 0
    %179 = vmatpush1.bf16.msra.mxu0 0
    %180 = vmatprep.subr.bf16.mxu0 0
    %181 = vmatpush1.bf16.msra.mxu0 0
    %182 = vmatprep.subr.bf16.mxu0 0
    %183 = vmatpush1.bf16.msra.mxu0 0
    %184 = vmatprep.subr.bf16.mxu0 0
    %185 = vmatpush1.bf16.msra.mxu0 0
    %186 = vmatprep.subr.bf16.mxu0 0
    %187 = vmatpush1.bf16.msra.mxu0 0
    %188 = vmatprep.subr.bf16.mxu0 0
    %189 = vmatpush1.bf16.msra.mxu0 0
    %190 = vmatprep.subr.bf16.mxu0 0
    %191 = vmatpush1.bf16.msra.mxu0 0
    %192 = vmatprep.subr.bf16.mxu0 0
    %193 = vmatpush1.bf16.msra.mxu0 0
    %194 = vmatprep.mubr.bf16.mxu0 0
    %195 = vmatmul.mubr.bf16.gmra.mrb[0].mxu0 %v112
    %v196 = vpop.f32.mrb[0].mxu0
    %v197 = vadd.f32 %v106, %v196
    %v198 = vpop.f32.mrb[0].mxu0
    %v199 = vpop.f32.mrb[0].mxu0
    %v200 = vadd.f32 %v106, %v199
    %v201 = vpop.f32.mrb[0].mxu0
    %202 = vdwg.mxu0
    %vm203 = vcmp.ge.f32.partialorder %v197, 0.0
    %vm204 = vcmp.ge.f32.partialorder %v200, 0.0
    %v205 = vmul.f32 %v197, 0.01
    %v206 = vmul.f32 %v200, 0.01
    %v207 = vsel %vm203, %v197, %v205
    %v208 = vsel %vm204, %v200, %v206
    %v209 = vld [vmem:[#allocation7] sm:$0xf]
    %v210 = vld [vmem:[#allocation7 + $0x4] sm:$0xf]
    %v211 = vld [vmem:[#allocation7 + $0x8] sm:$0xf]
    %v212 = vld [vmem:[#allocation7 + $0xc] sm:$0xf]
    %v213 = vld [vmem:[#allocation7 + $0x10] sm:$0xf]
    %v214 = vld [vmem:[#allocation7 + $0x14] sm:$0xf]
    %v215 = vld [vmem:[#allocation7 + $0x18] sm:$0xf]
    %v216 = vld [vmem:[#allocation7 + $0x1c] sm:$0xf]
    %v217 = vld [vmem:[#allocation7 + $0x20] sm:$0xf]
    %v218 = vld [vmem:[#allocation7 + $0x24] sm:$0xf]
    %v219 = vld [vmem:[#allocation7 + $0x28] sm:$0xf]
    %v220 = vld [vmem:[#allocation7 + $0x2c] sm:$0xf]
    %v221 = vld [vmem:[#allocation7 + $0x30] sm:$0xf]
    %v222 = vld [vmem:[#allocation7 + $0x34] sm:$0xf]
    %v223 = vld [vmem:[#allocation7 + $0x38] sm:$0xf]
    %v224 = vld [vmem:[#allocation7 + $0x3c] sm:$0xf]
    %v225 = vld [vmem:[%s4] sm:$0x1]
    %v226 = vpack.c.bf16 %v208, %v207
    %v228 = vlaneseq
    %v229 = vshrl.u32 %v228, 7
    %v230 = vsub.s32 0, %v229
    %v231 = vrot.slane %v225, %v230
    %v249 = vunpack.c.l.b16 %v209
    %v250 = vunpack.c.l.b16 %v210
    %v251 = vunpack.c.l.b16 %v211
    %v252 = vunpack.c.l.b16 %v212
    %v253 = vunpack.c.l.b16 %v213
    %v254 = vunpack.c.l.b16 %v214
    %v255 = vunpack.c.l.b16 %v215
    %v256 = vunpack.c.l.b16 %v216
    %v257 = vunpack.c.l.b16 %v217
    %v258 = vunpack.c.l.b16 %v218
    %v259 = vunpack.c.l.b16 %v219
    %v260 = vunpack.c.l.b16 %v220
    %v261 = vunpack.c.l.b16 %v221
    %v262 = vunpack.c.l.b16 %v222
    %v263 = vunpack.c.l.b16 %v223
    %v264 = vunpack.c.l.b16 %v224
    %v265 = vpack.c.b16 %v250, %v249
    %v266 = vpack.c.b16 %v252, %v251
    %v267 = vpack.c.b16 %v254, %v253
    %v268 = vpack.c.b16 %v256, %v255
    %v269 = vpack.c.b16 %v258, %v257
    %v270 = vpack.c.b16 %v260, %v259
    %v271 = vpack.c.b16 %v262, %v261
    %v272 = vpack.c.b16 %v264, %v263
    %281 = vmatprep.subr.bf16.mxu0 0
    %282 = vmatpush1.bf16.msra.mxu0 %v265
    %283 = vmatprep.subr.bf16.mxu0 0
    %284 = vmatpush1.bf16.msra.mxu0 %v266
    %285 = vmatprep.subr.bf16.mxu0 0
    %286 = vmatpush1.bf16.msra.mxu0 %v267
    %287 = vmatprep.subr.bf16.mxu0 0
    %288 = vmatpush1.bf16.msra.mxu0 %v268
    %289 = vmatprep.subr.bf16.mxu0 0
    %290 = vmatpush1.bf16.msra.mxu0 %v269
    %291 = vmatprep.subr.bf16.mxu0 0
    %292 = vmatpush1.bf16.msra.mxu0 %v270
    %293 = vmatprep.subr.bf16.mxu0 0
    %294 = vmatpush1.bf16.msra.mxu0 %v271
    %295 = vmatprep.subr.bf16.mxu0 0
    %296 = vmatpush1.bf16.msra.mxu0 %v272
    %297 = vmatprep.subr.bf16.mxu0 0
    %298 = vmatpush1.bf16.msra.mxu0 0
    %299 = vmatprep.subr.bf16.mxu0 0
    %300 = vmatpush1.bf16.msra.mxu0 0
    %301 = vmatprep.subr.bf16.mxu0 0
    %302 = vmatpush1.bf16.msra.mxu0 0
    %303 = vmatprep.subr.bf16.mxu0 0
    %304 = vmatpush1.bf16.msra.mxu0 0
    %305 = vmatprep.subr.bf16.mxu0 0
    %306 = vmatpush1.bf16.msra.mxu0 0
    %307 = vmatprep.subr.bf16.mxu0 0
    %308 = vmatpush1.bf16.msra.mxu0 0
    %309 = vmatprep.subr.bf16.mxu0 0
    %310 = vmatpush1.bf16.msra.mxu0 0
    %311 = vmatprep.subr.bf16.mxu0 0
    %312 = vmatpush1.bf16.msra.mxu0 0
    %313 = vmatprep.mubr.bf16.mxu0 0
    %314 = vmatmul.mubr.bf16.gmra.mrb[0].mxu0 %v226
    %v315 = vpop.f32.mrb[0].mxu0
    %v316 = vadd.f32 %v231, %v315
    %v317 = vpop.f32.mrb[0].mxu0
    %v318 = vpop.f32.mrb[0].mxu0
    %v319 = vadd.f32 %v231, %v318
    %v320 = vpop.f32.mrb[0].mxu0
    %321 = vdwg.mxu0
    %vm322 = vcmp.ge.f32.partialorder %v316, 0.0
    %vm323 = vcmp.ge.f32.partialorder %v319, 0.0
    %v324 = vmul.f32 %v316, 0.01
    %v325 = vmul.f32 %v319, 0.01
    %v326 = vsel %vm322, %v316, %v324
    %v327 = vsel %vm323, %v319, %v325
    %v328 = vadd.f32 %v326, %v207
    %v329 = vadd.f32 %v327, %v208
    %v330 = vpack.c.bf16 %v329, %v328
    %v331 = vld [vmem:[#allocation8] sm:$0xf]
    %v332 = vld [vmem:[#allocation8 + $0x4] sm:$0xf]
    %v333 = vld [vmem:[#allocation8 + $0x8] sm:$0xf]
    %v334 = vld [vmem:[#allocation8 + $0xc] sm:$0xf]
    %v335 = vld [vmem:[#allocation8 + $0x10] sm:$0xf]
    %v336 = vld [vmem:[#allocation8 + $0x14] sm:$0xf]
    %v337 = vld [vmem:[#allocation8 + $0x18] sm:$0xf]
    %v338 = vld [vmem:[#allocation8 + $0x1c] sm:$0xf]
    %v339 = vld [vmem:[#allocation8 + $0x20] sm:$0xf]
    %v340 = vld [vmem:[#allocation8 + $0x24] sm:$0xf]
    %v341 = vld [vmem:[#allocation8 + $0x28] sm:$0xf]
    %v342 = vld [vmem:[#allocation8 + $0x2c] sm:$0xf]
    %v343 = vld [vmem:[#allocation8 + $0x30] sm:$0xf]
    %v344 = vld [vmem:[#allocation8 + $0x34] sm:$0xf]
    %v345 = vld [vmem:[#allocation8 + $0x38] sm:$0xf]
    %v346 = vld [vmem:[#allocation8 + $0x3c] sm:$0xf]
    %v347 = vld [vmem:[%s6] sm:$0x1]
    %v349 = vlaneseq
    %v350 = vshrl.u32 %v349, 7
    %v351 = vsub.s32 0, %v350
    %v352 = vrot.slane %v347, %v351
    %v370 = vunpack.c.l.b16 %v331
    %v371 = vunpack.c.l.b16 %v332
    %v372 = vunpack.c.l.b16 %v333
    %v373 = vunpack.c.l.b16 %v334
    %v374 = vunpack.c.l.b16 %v335
    %v375 = vunpack.c.l.b16 %v336
    %v376 = vunpack.c.l.b16 %v337
    %v377 = vunpack.c.l.b16 %v338
    %v378 = vunpack.c.l.b16 %v339
    %v379 = vunpack.c.l.b16 %v340
    %v380 = vunpack.c.l.b16 %v341
    %v381 = vunpack.c.l.b16 %v342
    %v382 = vunpack.c.l.b16 %v343
    %v383 = vunpack.c.l.b16 %v344
    %v384 = vunpack.c.l.b16 %v345
    %v385 = vunpack.c.l.b16 %v346
    %v386 = vpack.c.b16 %v371, %v370
    %v387 = vpack.c.b16 %v373, %v372
    %v388 = vpack.c.b16 %v375, %v374
    %v389 = vpack.c.b16 %v377, %v376
    %v390 = vpack.c.b16 %v379, %v378
    %v391 = vpack.c.b16 %v381, %v380
    %v392 = vpack.c.b16 %v383, %v382
    %v393 = vpack.c.b16 %v385, %v384
    %402 = vmatprep.subr.bf16.mxu0 0
    %403 = vmatpush1.bf16.msra.mxu0 %v386
    %404 = vmatprep.subr.bf16.mxu0 0
    %405 = vmatpush1.bf16.msra.mxu0 %v387
    %406 = vmatprep.subr.bf16.mxu0 0
    %407 = vmatpush1.bf16.msra.mxu0 %v388
    %408 = vmatprep.subr.bf16.mxu0 0
    %409 = vmatpush1.bf16.msra.mxu0 %v389
    %410 = vmatprep.subr.bf16.mxu0 0
    %411 = vmatpush1.bf16.msra.mxu0 %v390
    %412 = vmatprep.subr.bf16.mxu0 0
    %413 = vmatpush1.bf16.msra.mxu0 %v391
    %414 = vmatprep.subr.bf16.mxu0 0
    %415 = vmatpush1.bf16.msra.mxu0 %v392
    %416 = vmatprep.subr.bf16.mxu0 0
    %417 = vmatpush1.bf16.msra.mxu0 %v393
    %418 = vmatprep.subr.bf16.mxu0 0
    %419 = vmatpush1.bf16.msra.mxu0 0
    %420 = vmatprep.subr.bf16.mxu0 0
    %421 = vmatpush1.bf16.msra.mxu0 0
    %422 = vmatprep.subr.bf16.mxu0 0
    %423 = vmatpush1.bf16.msra.mxu0 0
    %424 = vmatprep.subr.bf16.mxu0 0
    %425 = vmatpush1.bf16.msra.mxu0 0
    %426 = vmatprep.subr.bf16.mxu0 0
    %427 = vmatpush1.bf16.msra.mxu0 0
    %428 = vmatprep.subr.bf16.mxu0 0
    %429 = vmatpush1.bf16.msra.mxu0 0
    %430 = vmatprep.subr.bf16.mxu0 0
    %431 = vmatpush1.bf16.msra.mxu0 0
    %432 = vmatprep.subr.bf16.mxu0 0
    %433 = vmatpush1.bf16.msra.mxu0 0
    %434 = vmatprep.mubr.bf16.mxu0 0
    %435 = vmatmul.mubr.bf16.gmra.mrb[0].mxu0 %v330
    %v436 = vpop.f32.mrb[0].mxu0
    %v437 = vadd.f32 %v352, %v436
    %v438 = vpop.f32.mrb[0].mxu0
    %v439 = vpop.f32.mrb[0].mxu0
    %v440 = vadd.f32 %v352, %v439
    %v441 = vpop.f32.mrb[0].mxu0
    %442 = vdwg.mxu0
    %443 = vst [vmem:[#allocation10] sm:$0xff] %v437
    %444 = vst [vmem:[#allocation10 + $0x8] sm:$0xff] %v440
    // Predicated region
    $region46: #{tpu_custom_call.1} parent=1 // pred_check
      _
    $region47: #{tpu_custom_call.1} parent=1 // pred_check_branch
      %446 = sbr.rel (0) target = $region49
    $region48: #{tpu_custom_call.1} parent=1 // pred_region
      %s448 = ssub.s32 256, 256
      %449 = vsyncadd [#allocation4], %s448
      %s450 = sshll.u32 [#allocation10], 4
      %s451 = int_to_ptr.vmem [resolvable:$true] %s450
      %456 = dma.vmem_to_hbm [thread:$0]  %s451, 256, %s7, [#allocation4], 128, 128, 8
    $region49: #{tpu_custom_call.1} parent=1 // pred_fallthru
      _
    // Predicated region
    $region50: #{tpu_custom_call.1} parent=1 // pred_check
      _
    $region51: #{tpu_custom_call.1} parent=1 // pred_check_branch
      %458 = sbr.rel (0) target = $region53
    $region52: #{tpu_custom_call.1} parent=1 // pred_region
      %459 = dma.done [#allocation4], 256
    $region53: #{tpu_custom_call.1} parent=1 // pred_fallthru
      _
    %460 = vsyncpa [#allocation3], 1
    %461 = vsyncpa [#allocation6], 1
    %462 = vsyncpa [#allocation9], 1
    %463 = vsyncpa [#allocation4], 1

</llo_original>
